<compile_context>
chip_gen: v5e
topology: v5e:2x2
jax: 0.10.0
libtpu: 0.0.40
codegen_flags: <defaults>
</compile_context>

<pallas_src>
import jax
import jax.numpy as jnp
from jax.experimental import pallas as pl
from jax.experimental.pallas import tpu as pltpu

N_IN, N_HID, N_OUT = 4, 3, 2
_W1_OFF = 0
_B1_OFF = _W1_OFF + N_HID * N_IN       # 12
_W2_OFF = _B1_OFF + N_HID              # 15
_B2_OFF = _W2_OFF + N_OUT * N_HID      # 21
_N_PARAMS = _B2_OFF + N_OUT            # 23


def mlp_kernel(p_ref, x_ref, o_ref):
    """Sublane/lane-dense tiny-MLP tile.

    p_ref : SMEM f32[23]            [w1(3x4), b1(3), w2(2x3), b2(2)] row-major
    x_ref : VMEM [8*N_IN,  TB]      row 8*f + s = input feature f, sub-block s
    o_ref : VMEM [8*N_OUT, TB]      row 8*m + s = output feature m, sub-block s

    Every vector op runs on a full [8, TB] slab (all 8 sublanes, 128 lanes);
    the result is written with a single unmasked full-block store.
    """
    w1 = lambda h, f: p_ref[_W1_OFF + h * N_IN + f]
    b1 = lambda h: p_ref[_B1_OFF + h]
    w2 = lambda m, h: p_ref[_W2_OFF + m * N_HID + h]
    b2 = lambda m: p_ref[_B2_OFF + m]

    # N_IN fully-dense [8, TB] feature slabs (8-row aligned slices: free views).
    xf = [x_ref[8 * f:8 * (f + 1), :] for f in range(N_IN)]

    # Layer 1 + ReLU: unrolled scalar*slab FMAs on the VPU (no MXU needed).
    h = []
    for j in range(N_HID):
        acc = w1(j, 0) * xf[0]
        for f in range(1, N_IN):
            acc = acc + w1(j, f) * xf[f]
        h.append(jnp.maximum(acc + b1(j), 0.0))

    # Layer 2, then one full-width store.
    rows = []
    for m in range(N_OUT):
        acc = w2(m, 0) * h[0]
        for j in range(1, N_HID):
            acc = acc + w2(m, j) * h[j]
        rows.append(acc + b2(m))
    o_ref[...] = jnp.concatenate(rows, axis=0).astype(o_ref.dtype)


def _mlp_reference(x, w1, b1, w2, b2):
    return jnp.maximum(x @ w1.T + b1, 0.0) @ w2.T + b2


def mlp_forward(x, w1, b1, w2, b2, *, tb=32768, min_kernel_batch=1024):
    """x: [B, 4] (torch.nn.Linear layout); w1:[3,4] b1:[3] w2:[2,3] b2:[2]."""
    B, fin = x.shape
    assert fin == N_IN

    # Small-batch fast path: a single fused XLA expression beats three
    # dispatches (pack, kernel, unpack) of launch overhead for tiny B.
    if B < min_kernel_batch:
        return _mlp_reference(x, w1, b1, w2, b2)

    # Flatten all params into one 1-D SMEM array (avoids padded 2-D SMEM refs).
    params = jnp.concatenate(
        [w1.reshape(-1), b1.reshape(-1), w2.reshape(-1), b2.reshape(-1)]
    ).astype(jnp.float32)
    assert params.shape[0] == _N_PARAMS

    # Lane tiling: batch is split into 8 contiguous sub-blocks (sublanes) of
    # Q8 lanes each; the grid walks Q8 in chunks of tb lanes.
    q = pl.cdiv(B, 8)                                  # lanes needed
    tb_eff = max(128, min(tb, pl.cdiv(q, 128) * 128))  # multiple of 128
    q8 = pl.cdiv(q, tb_eff) * tb_eff
    b_pad = 8 * q8
    grid = (q8 // tb_eff,)

    # Pack: [B_pad, 4] -> [8, Q8, 4] -> [4, 8, Q8] -> [32, Q8]
    # row 8*f + s holds feature f of batches s*Q8 + j  (j = lane index).
    x_pad = jnp.pad(x, ((0, b_pad - B), (0, 0)))
    xp = x_pad.reshape(8, q8, N_IN).transpose(2, 0, 1).reshape(8 * N_IN, q8)

    out_p = pl.pallas_call(
        mlp_kernel,
        out_shape=jax.ShapeDtypeStruct((8 * N_OUT, q8), x.dtype),
        grid=grid,
        in_specs=[
            pl.BlockSpec(memory_space=pltpu.MemorySpace.SMEM),      # params
            pl.BlockSpec((8 * N_IN, tb_eff), lambda i: (0, i)),     # x slab
        ],
        out_specs=pl.BlockSpec((8 * N_OUT, tb_eff), lambda i: (0, i)),
        compiler_params=pltpu.CompilerParams(
            dimension_semantics=("parallel",),
            vmem_limit_bytes=32 * 1024 * 1024,
        ),
    )(params, xp)

    # Unpack: [16, Q8] (row 8*m + s) -> [2, 8, Q8] -> [8, Q8, 2] -> [B_pad, 2]
    out = out_p.reshape(N_OUT, 8, q8).transpose(1, 2, 0).reshape(b_pad, N_OUT)
    return out[:B]


def init_params(key):
    # Mirror weight_init: weight ~ N(0, 0.02), clamped to [-2, 2]; bias = 0.
    k1, k2 = jax.random.split(key)
    w1 = jnp.clip(jax.random.normal(k1, (N_HID, N_IN), jnp.float32) * 0.02, -2.0, 2.0)
    b1 = jnp.zeros((N_HID,), jnp.float32)
    w2 = jnp.clip(jax.random.normal(k2, (N_OUT, N_HID), jnp.float32) * 0.02, -2.0, 2.0)
    b2 = jnp.zeros((N_OUT,), jnp.float32)
    return w1, b1, w2, b2


if __name__ == "__main__":
    key = jax.random.PRNGKey(0)
    k_x, k_p = jax.random.split(key)
    w1, b1, w2, b2 = init_params(k_p)

    # 1) Small batch consistent with the torch module (hits the fast path).
    x_small = jax.random.normal(k_x, (8, N_IN), jnp.float32)
    out_small = mlp_forward(x_small, w1, b1, w2, b2)
    jax.block_until_ready(out_small)
    assert out_small.shape == (8, N_OUT)
    assert jnp.allclose(out_small, _mlp_reference(x_small, w1, b1, w2, b2),
                        atol=1e-5, rtol=1e-5)

    # 2) Kernel path, single grid step (B multiple of 8, fits one tile).
    x_mid = jax.random.normal(k_x, (4096, N_IN), jnp.float32)
    out_mid = mlp_forward(x_mid, w1, b1, w2, b2)
    jax.block_until_ready(out_mid)
    assert out_mid.shape == (4096, N_OUT)
    assert jnp.allclose(out_mid, _mlp_reference(x_mid, w1, b1, w2, b2),
                        atol=1e-5, rtol=1e-5)

    # 3) Kernel path, multi-step grid + ragged batch (exercises lane padding).
    x_big = jax.random.normal(k_x, (20000, N_IN), jnp.float32)
    out_big = mlp_forward(x_big, w1, b1, w2, b2, tb=1024)
    jax.block_until_ready(out_big)
    assert out_big.shape == (20000, N_OUT)
    assert jnp.allclose(out_big, _mlp_reference(x_big, w1, b1, w2, b2),
                        atol=1e-5, rtol=1e-5)

    print("KERNEL_OK")
</pallas_src>

<mosaic_0001>
module attributes {stable_mosaic.version = 11 : i64} {
  func.func @mlp_kernel(%arg0: i32, %arg1: memref<23xf32, #tpu.memory_space<smem>>, %arg2: memref<32x512xf32, #tpu.memory_space<vmem>>, %arg3: memref<16x512xf32, #tpu.memory_space<vmem>>) attributes {dimension_semantics = [#tpu.dimension_semantics<parallel>], iteration_bounds = array<i64: 1>, scalar_prefetch = 0 : i64, scratch_operands = 0 : i64, tpu.core_type = #tpu.core_type<tc>, window_params = [{transform_indices = @transform_0, window_bounds = array<i64: 23>}, {transform_indices = @transform_1, window_bounds = array<i64: 32, 512>}, {transform_indices = @transform_2, window_bounds = array<i64: 16, 512>}]} {
    %c0 = arith.constant 0 : index
    %c0_0 = arith.constant 0 : index
    %0 = vector.load %arg2[%c0, %c0_0] : memref<32x512xf32, #tpu.memory_space<vmem>>, vector<8x512xf32>
    %c8 = arith.constant 8 : index
    %c0_1 = arith.constant 0 : index
    %1 = vector.load %arg2[%c8, %c0_1] : memref<32x512xf32, #tpu.memory_space<vmem>>, vector<8x512xf32>
    %c16 = arith.constant 16 : index
    %c0_2 = arith.constant 0 : index
    %2 = vector.load %arg2[%c16, %c0_2] : memref<32x512xf32, #tpu.memory_space<vmem>>, vector<8x512xf32>
    %c24 = arith.constant 24 : index
    %c0_3 = arith.constant 0 : index
    %3 = vector.load %arg2[%c24, %c0_3] : memref<32x512xf32, #tpu.memory_space<vmem>>, vector<8x512xf32>
    %c0_4 = arith.constant 0 : index
    %4 = memref.load %arg1[%c0_4] : memref<23xf32, #tpu.memory_space<smem>>
    %5 = vector.broadcast %4 : f32 to vector<8x512xf32>
    %6 = arith.mulf %5, %0 : vector<8x512xf32>
    %c1 = arith.constant 1 : index
    %7 = memref.load %arg1[%c1] : memref<23xf32, #tpu.memory_space<smem>>
    %8 = vector.broadcast %7 : f32 to vector<8x512xf32>
    %9 = arith.mulf %8, %1 : vector<8x512xf32>
    %10 = arith.addf %6, %9 : vector<8x512xf32>
    %c2 = arith.constant 2 : index
    %11 = memref.load %arg1[%c2] : memref<23xf32, #tpu.memory_space<smem>>
    %12 = vector.broadcast %11 : f32 to vector<8x512xf32>
    %13 = arith.mulf %12, %2 : vector<8x512xf32>
    %14 = arith.addf %10, %13 : vector<8x512xf32>
    %c3 = arith.constant 3 : index
    %15 = memref.load %arg1[%c3] : memref<23xf32, #tpu.memory_space<smem>>
    %16 = vector.broadcast %15 : f32 to vector<8x512xf32>
    %17 = arith.mulf %16, %3 : vector<8x512xf32>
    %18 = arith.addf %14, %17 : vector<8x512xf32>
    %c12 = arith.constant 12 : index
    %19 = memref.load %arg1[%c12] : memref<23xf32, #tpu.memory_space<smem>>
    %20 = vector.broadcast %19 : f32 to vector<8x512xf32>
    %21 = arith.addf %18, %20 : vector<8x512xf32>
    %cst = arith.constant 0.000000e+00 : f32
    %22 = vector.broadcast %cst : f32 to vector<8x512xf32>
    %23 = arith.maximumf %21, %22 : vector<8x512xf32>
    %c4 = arith.constant 4 : index
    %24 = memref.load %arg1[%c4] : memref<23xf32, #tpu.memory_space<smem>>
    %25 = vector.broadcast %24 : f32 to vector<8x512xf32>
    %26 = arith.mulf %25, %0 : vector<8x512xf32>
    %c5 = arith.constant 5 : index
    %27 = memref.load %arg1[%c5] : memref<23xf32, #tpu.memory_space<smem>>
    %28 = vector.broadcast %27 : f32 to vector<8x512xf32>
    %29 = arith.mulf %28, %1 : vector<8x512xf32>
    %30 = arith.addf %26, %29 : vector<8x512xf32>
    %c6 = arith.constant 6 : index
    %31 = memref.load %arg1[%c6] : memref<23xf32, #tpu.memory_space<smem>>
    %32 = vector.broadcast %31 : f32 to vector<8x512xf32>
    %33 = arith.mulf %32, %2 : vector<8x512xf32>
    %34 = arith.addf %30, %33 : vector<8x512xf32>
    %c7 = arith.constant 7 : index
    %35 = memref.load %arg1[%c7] : memref<23xf32, #tpu.memory_space<smem>>
    %36 = vector.broadcast %35 : f32 to vector<8x512xf32>
    %37 = arith.mulf %36, %3 : vector<8x512xf32>
    %38 = arith.addf %34, %37 : vector<8x512xf32>
    %c13 = arith.constant 13 : index
    %39 = memref.load %arg1[%c13] : memref<23xf32, #tpu.memory_space<smem>>
    %40 = vector.broadcast %39 : f32 to vector<8x512xf32>
    %41 = arith.addf %38, %40 : vector<8x512xf32>
    %cst_5 = arith.constant 0.000000e+00 : f32
    %42 = vector.broadcast %cst_5 : f32 to vector<8x512xf32>
    %43 = arith.maximumf %41, %42 : vector<8x512xf32>
    %c8_6 = arith.constant 8 : index
    %44 = memref.load %arg1[%c8_6] : memref<23xf32, #tpu.memory_space<smem>>
    %45 = vector.broadcast %44 : f32 to vector<8x512xf32>
    %46 = arith.mulf %45, %0 : vector<8x512xf32>
    %c9 = arith.constant 9 : index
    %47 = memref.load %arg1[%c9] : memref<23xf32, #tpu.memory_space<smem>>
    %48 = vector.broadcast %47 : f32 to vector<8x512xf32>
    %49 = arith.mulf %48, %1 : vector<8x512xf32>
    %50 = arith.addf %46, %49 : vector<8x512xf32>
    %c10 = arith.constant 10 : index
    %51 = memref.load %arg1[%c10] : memref<23xf32, #tpu.memory_space<smem>>
    %52 = vector.broadcast %51 : f32 to vector<8x512xf32>
    %53 = arith.mulf %52, %2 : vector<8x512xf32>
    %54 = arith.addf %50, %53 : vector<8x512xf32>
    %c11 = arith.constant 11 : index
    %55 = memref.load %arg1[%c11] : memref<23xf32, #tpu.memory_space<smem>>
    %56 = vector.broadcast %55 : f32 to vector<8x512xf32>
    %57 = arith.mulf %56, %3 : vector<8x512xf32>
    %58 = arith.addf %54, %57 : vector<8x512xf32>
    %c14 = arith.constant 14 : index
    %59 = memref.load %arg1[%c14] : memref<23xf32, #tpu.memory_space<smem>>
    %60 = vector.broadcast %59 : f32 to vector<8x512xf32>
    %61 = arith.addf %58, %60 : vector<8x512xf32>
    %cst_7 = arith.constant 0.000000e+00 : f32
    %62 = vector.broadcast %cst_7 : f32 to vector<8x512xf32>
    %63 = arith.maximumf %61, %62 : vector<8x512xf32>
    %c15 = arith.constant 15 : index
    %64 = memref.load %arg1[%c15] : memref<23xf32, #tpu.memory_space<smem>>
    %65 = vector.broadcast %64 : f32 to vector<8x512xf32>
    %66 = arith.mulf %65, %23 : vector<8x512xf32>
    %c16_8 = arith.constant 16 : index
    %67 = memref.load %arg1[%c16_8] : memref<23xf32, #tpu.memory_space<smem>>
    %68 = vector.broadcast %67 : f32 to vector<8x512xf32>
    %69 = arith.mulf %68, %43 : vector<8x512xf32>
    %70 = arith.addf %66, %69 : vector<8x512xf32>
    %c17 = arith.constant 17 : index
    %71 = memref.load %arg1[%c17] : memref<23xf32, #tpu.memory_space<smem>>
    %72 = vector.broadcast %71 : f32 to vector<8x512xf32>
    %73 = arith.mulf %72, %63 : vector<8x512xf32>
    %74 = arith.addf %70, %73 : vector<8x512xf32>
    %c21 = arith.constant 21 : index
    %75 = memref.load %arg1[%c21] : memref<23xf32, #tpu.memory_space<smem>>
    %76 = vector.broadcast %75 : f32 to vector<8x512xf32>
    %77 = arith.addf %74, %76 : vector<8x512xf32>
    %c18 = arith.constant 18 : index
    %78 = memref.load %arg1[%c18] : memref<23xf32, #tpu.memory_space<smem>>
    %79 = vector.broadcast %78 : f32 to vector<8x512xf32>
    %80 = arith.mulf %79, %23 : vector<8x512xf32>
    %c19 = arith.constant 19 : index
    %81 = memref.load %arg1[%c19] : memref<23xf32, #tpu.memory_space<smem>>
    %82 = vector.broadcast %81 : f32 to vector<8x512xf32>
    %83 = arith.mulf %82, %43 : vector<8x512xf32>
    %84 = arith.addf %80, %83 : vector<8x512xf32>
    %c20 = arith.constant 20 : index
    %85 = memref.load %arg1[%c20] : memref<23xf32, #tpu.memory_space<smem>>
    %86 = vector.broadcast %85 : f32 to vector<8x512xf32>
    %87 = arith.mulf %86, %63 : vector<8x512xf32>
    %88 = arith.addf %84, %87 : vector<8x512xf32>
    %c22 = arith.constant 22 : index
    %89 = memref.load %arg1[%c22] : memref<23xf32, #tpu.memory_space<smem>>
    %90 = vector.broadcast %89 : f32 to vector<8x512xf32>
    %91 = arith.addf %88, %90 : vector<8x512xf32>
    %92 = tpu.concatenate %77, %91 in 0 : vector<8x512xf32>, vector<8x512xf32> -> vector<16x512xf32>
    %c0_9 = arith.constant 0 : index
    %c0_10 = arith.constant 0 : index
    %93 = vector.load %arg3[%c0_9, %c0_10] : memref<16x512xf32, #tpu.memory_space<vmem>>, vector<16x512xf32>
    tpu.vector_store %arg3[%c0_9, %c0_10], %92 {strides = array<i32>} : memref<16x512xf32, #tpu.memory_space<vmem>>, vector<16x512xf32>,
    return
  }
  func.func @transform_0(%arg0: i32) -> i32 {
    %c0_i32 = arith.constant 0 : i32
    %c0_i32_0 = arith.constant 0 : i32
    return %c0_i32 : i32
  }
  func.func @transform_1(%arg0: i32) -> (i32, i32) {
    %c0_i32 = arith.constant 0 : i32
    %c0_i32_0 = arith.constant 0 : i32
    return %c0_i32, %arg0 : i32, i32
  }
  func.func @transform_2(%arg0: i32) -> (i32, i32) {
    %c0_i32 = arith.constant 0 : i32
    %c0_i32_0 = arith.constant 0 : i32
    return %c0_i32, %arg0 : i32, i32
  }
}

</mosaic_0001>

<llo_original>
// kernel: tpu_custom_call.1
$region0: #{tpu_custom_call.1}
  #allocation0 [shape = 'u32[]', space=smem, size = 0x4, offset = 0x4, fixed_abs, tag = 'smem constant byte address 0x4 - core index']
  #allocation1 [shape = 'u32[72,128]{1,0:T(1,128)}', space=vmem, size = 0x9000, scoped, tag = 'internal scratch']
  %s0 = inlined_call_operand.hbm [shape: f32[23], index: 0, kind: input, shape index: {}]
  %s1 = inlined_call_operand.hbm [shape: f32[32,512], index: 1, kind: input, shape index: {}]
  %s2 = inlined_call_operand.hbm [shape: f32[16,512], index: 2, kind: output, shape index: {}]
  %s3 = sld [smem:[#allocation0]]
  $region26: #{tpu_custom_call.1} parent=0
    _
  %s5 = ssub.s32 1, %s3
  %s6 = scalar_select 0, %s5, %s3
  $region1: #{tpu_custom_call.1} parent=0
    #allocation2 [shape = 'u8[512]{0}', space=smem, size = 0x200, scoped, tag = 'input window, operand 0, single buffered']
    #allocation3 [shape = 's32[1]{0}', space=sflag, size = 0x4, scoped, tag = 'scoped memory for tpu_custom_call.1']
    #allocation4 [shape = 's32[1]{0}', space=sflag, size = 0x4, scoped, tag = 'scoped memory for tpu_custom_call.1']
    #allocation5 [shape = 's32[1]{0}', space=sflag, size = 0x4, scoped, tag = 'scoped memory for tpu_custom_call.1']
    #allocation6 [shape = 'u8[65536]{0}', space=vmem, size = 0x10000, scoped, tag = 'input window, operand 1, single buffered']
    #allocation7 [shape = 'u8[32768]{0}', space=vmem, size = 0x8000, scoped, tag = 'output window, operand 0, single buffered']
    %7 = vsyncpa [#allocation5], 0
    %8 = vsyncpa [#allocation3], 0
    %9 = vsyncpa [#allocation4], 0
    // Predicated region
    $region2: #{tpu_custom_call.1} parent=1 // pred_check
      _
    $region3: #{tpu_custom_call.1} parent=1 // pred_check_branch
      %11 = sbr.rel (0) target = $region5
    $region4: #{tpu_custom_call.1} parent=1 // pred_region
      %13 = vsyncadd [#allocation5], 0
      %s15 = sshll.u32 %s0, 4
      %s16 = int_to_ptr.hbm [resolvable:$true] %s15
      %18 = dma.hbm_to_smem %s16, 16, [#allocation2], [#allocation5]
    $region5: #{tpu_custom_call.1} parent=1 // pred_fallthru
      _
    // Predicated region
    $region6: #{tpu_custom_call.1} parent=1 // pred_check
      _
    $region7: #{tpu_custom_call.1} parent=1 // pred_check_branch
      %20 = sbr.rel (0) target = $region9
    $region8: #{tpu_custom_call.1} parent=1 // pred_region
      %22 = vsyncadd [#allocation3], 0
      %s23 = sshll.u32 %s1, 4
      %s24 = int_to_ptr.hbm [resolvable:$true] %s23
      %s25 = sshll.u32 [#allocation6], 4
      %s26 = int_to_ptr.vmem [resolvable:$true] %s25
      %31 = dma.hbm_to_vmem [thread:$0]  %s24, 2048, %s26, [#allocation3], 512, 512, 32
    $region9: #{tpu_custom_call.1} parent=1 // pred_fallthru
      _
    // Predicated region
    $region10: #{tpu_custom_call.1} parent=1 // pred_check
      _
    $region11: #{tpu_custom_call.1} parent=1 // pred_check_branch
      %33 = sbr.rel (0) target = $region13
    $region12: #{tpu_custom_call.1} parent=1 // pred_region
      %35 = dma.done [#allocation5], 16
    $region13: #{tpu_custom_call.1} parent=1 // pred_fallthru
      _
    // Predicated region
    $region14: #{tpu_custom_call.1} parent=1 // pred_check
      _
    $region15: #{tpu_custom_call.1} parent=1 // pred_check_branch
      %37 = sbr.rel (0) target = $region17
    $region16: #{tpu_custom_call.1} parent=1 // pred_region
      %39 = dma.done [#allocation3], 2048
    $region17: #{tpu_custom_call.1} parent=1 // pred_fallthru
      _
    %40 = sfence
    %v41 = vld [vmem:[#allocation6] sm:$0xff]
    %v42 = vld [vmem:[#allocation6 + $0x8] sm:$0xff]
    %v43 = vld [vmem:[#allocation6 + $0x10] sm:$0xff]
    %v44 = vld [vmem:[#allocation6 + $0x18] sm:$0xff]
    %v45 = vld [vmem:[#allocation6 + $0x20] sm:$0xff]
    %v46 = vld [vmem:[#allocation6 + $0x28] sm:$0xff]
    %v47 = vld [vmem:[#allocation6 + $0x30] sm:$0xff]
    %v48 = vld [vmem:[#allocation6 + $0x38] sm:$0xff]
    %v49 = vld [vmem:[#allocation6 + $0x40] sm:$0xff]
    %v50 = vld [vmem:[#allocation6 + $0x48] sm:$0xff]
    %v51 = vld [vmem:[#allocation6 + $0x50] sm:$0xff]
    %v52 = vld [vmem:[#allocation6 + $0x58] sm:$0xff]
    %v53 = vld [vmem:[#allocation6 + $0x60] sm:$0xff]
    %v54 = vld [vmem:[#allocation6 + $0x68] sm:$0xff]
    %v55 = vld [vmem:[#allocation6 + $0x70] sm:$0xff]
    %v56 = vld [vmem:[#allocation6 + $0x78] sm:$0xff]
    %s57 = sld [smem:[#allocation2]]
    %v58 = vstv %s57
    %v59 = vmul.f32 %v58, %v41
    %v60 = vmul.f32 %v58, %v42
    %v61 = vmul.f32 %v58, %v43
    %v62 = vmul.f32 %v58, %v44
    %s63 = sld [smem:[#allocation2 + $0x1]]
    %v64 = vstv %s63
    %v65 = vmul.f32 %v64, %v45
    %v66 = vmul.f32 %v64, %v46
    %v67 = vmul.f32 %v64, %v47
    %v68 = vmul.f32 %v64, %v48
    %v69 = vadd.f32 %v59, %v65
    %v70 = vadd.f32 %v60, %v66
    %v71 = vadd.f32 %v61, %v67
    %v72 = vadd.f32 %v62, %v68
    %s73 = sld [smem:[#allocation2 + $0x2]]
    %v74 = vstv %s73
    %v75 = vmul.f32 %v74, %v49
    %v76 = vmul.f32 %v74, %v50
    %v77 = vmul.f32 %v74, %v51
    %v78 = vmul.f32 %v74, %v52
    %v79 = vadd.f32 %v69, %v75
    %v80 = vadd.f32 %v70, %v76
    %v81 = vadd.f32 %v71, %v77
    %v82 = vadd.f32 %v72, %v78
    %s83 = sld [smem:[#allocation2 + $0x3]]
    %v84 = vstv %s83
    %v85 = vmul.f32 %v84, %v53
    %v86 = vmul.f32 %v84, %v54
    %v87 = vmul.f32 %v84, %v55
    %v88 = vmul.f32 %v84, %v56
    %v89 = vadd.f32 %v79, %v85
    %v90 = vadd.f32 %v80, %v86
    %v91 = vadd.f32 %v81, %v87
    %v92 = vadd.f32 %v82, %v88
    %s93 = sld [smem:[#allocation2 + $0xc]]
    %v94 = vstv %s93
    %v95 = vadd.f32 %v89, %v94
    %v96 = vadd.f32 %v90, %v94
    %v97 = vadd.f32 %v91, %v94
    %v98 = vadd.f32 %v92, %v94
    %v99 = vmax.f32 %v95, 0.0
    %v100 = vmax.f32 %v96, 0.0
    %v101 = vmax.f32 %v97, 0.0
    %v102 = vmax.f32 %v98, 0.0
    %s103 = sld [smem:[#allocation2 + $0x4]]
    %v104 = vstv %s103
    %v105 = vmul.f32 %v104, %v41
    %v106 = vmul.f32 %v104, %v42
    %v107 = vmul.f32 %v104, %v43
    %v108 = vmul.f32 %v104, %v44
    %s109 = sld [smem:[#allocation2 + $0x5]]
    %v110 = vstv %s109
    %v111 = vmul.f32 %v110, %v45
    %v112 = vmul.f32 %v110, %v46
    %v113 = vmul.f32 %v110, %v47
    %v114 = vmul.f32 %v110, %v48
    %v115 = vadd.f32 %v105, %v111
    %v116 = vadd.f32 %v106, %v112
    %v117 = vadd.f32 %v107, %v113
    %v118 = vadd.f32 %v108, %v114
    %s119 = sld [smem:[#allocation2 + $0x6]]
    %v120 = vstv %s119
    %v121 = vmul.f32 %v120, %v49
    %v122 = vmul.f32 %v120, %v50
    %v123 = vmul.f32 %v120, %v51
    %v124 = vmul.f32 %v120, %v52
    %v125 = vadd.f32 %v115, %v121
    %v126 = vadd.f32 %v116, %v122
    %v127 = vadd.f32 %v117, %v123
    %v128 = vadd.f32 %v118, %v124
    %s129 = sld [smem:[#allocation2 + $0x7]]
    %v130 = vstv %s129
    %v131 = vmul.f32 %v130, %v53
    %v132 = vmul.f32 %v130, %v54
    %v133 = vmul.f32 %v130, %v55
    %v134 = vmul.f32 %v130, %v56
    %v135 = vadd.f32 %v125, %v131
    %v136 = vadd.f32 %v126, %v132
    %v137 = vadd.f32 %v127, %v133
    %v138 = vadd.f32 %v128, %v134
    %s139 = sld [smem:[#allocation2 + $0xd]]
    %v140 = vstv %s139
    %v141 = vadd.f32 %v135, %v140
    %v142 = vadd.f32 %v136, %v140
    %v143 = vadd.f32 %v137, %v140
    %v144 = vadd.f32 %v138, %v140
    %v145 = vmax.f32 %v141, 0.0
    %v146 = vmax.f32 %v142, 0.0
    %v147 = vmax.f32 %v143, 0.0
    %v148 = vmax.f32 %v144, 0.0
    %s149 = sld [smem:[#allocation2 + $0x8]]
    %v150 = vstv %s149
    %v151 = vmul.f32 %v150, %v41
    %v152 = vmul.f32 %v150, %v42
    %v153 = vmul.f32 %v150, %v43
    %v154 = vmul.f32 %v150, %v44
    %s155 = sld [smem:[#allocation2 + $0x9]]
    %v156 = vstv %s155
    %v157 = vmul.f32 %v156, %v45
    %v158 = vmul.f32 %v156, %v46
    %v159 = vmul.f32 %v156, %v47
    %v160 = vmul.f32 %v156, %v48
    %v161 = vadd.f32 %v151, %v157
    %v162 = vadd.f32 %v152, %v158
    %v163 = vadd.f32 %v153, %v159
    %v164 = vadd.f32 %v154, %v160
    %s165 = sld [smem:[#allocation2 + $0xa]]
    %v166 = vstv %s165
    %v167 = vmul.f32 %v166, %v49
    %v168 = vmul.f32 %v166, %v50
    %v169 = vmul.f32 %v166, %v51
    %v170 = vmul.f32 %v166, %v52
    %v171 = vadd.f32 %v161, %v167
    %v172 = vadd.f32 %v162, %v168
    %v173 = vadd.f32 %v163, %v169
    %v174 = vadd.f32 %v164, %v170
    %s175 = sld [smem:[#allocation2 + $0xb]]
    %v176 = vstv %s175
    %v177 = vmul.f32 %v176, %v53
    %v178 = vmul.f32 %v176, %v54
    %v179 = vmul.f32 %v176, %v55
    %v180 = vmul.f32 %v176, %v56
    %v181 = vadd.f32 %v171, %v177
    %v182 = vadd.f32 %v172, %v178
    %v183 = vadd.f32 %v173, %v179
    %v184 = vadd.f32 %v174, %v180
    %s185 = sld [smem:[#allocation2 + $0xe]]
    %v186 = vstv %s185
    %v187 = vadd.f32 %v181, %v186
    %v188 = vadd.f32 %v182, %v186
    %v189 = vadd.f32 %v183, %v186
    %v190 = vadd.f32 %v184, %v186
    %v191 = vmax.f32 %v187, 0.0
    %v192 = vmax.f32 %v188, 0.0
    %v193 = vmax.f32 %v189, 0.0
    %v194 = vmax.f32 %v190, 0.0
    %s195 = sld [smem:[#allocation2 + $0xf]]
    %v196 = vstv %s195
    %v197 = vmul.f32 %v196, %v99
    %v198 = vmul.f32 %v196, %v100
    %v199 = vmul.f32 %v196, %v101
    %v200 = vmul.f32 %v196, %v102
    %s201 = sld [smem:[#allocation2 + $0x10]]
    %v202 = vstv %s201
    %v203 = vmul.f32 %v202, %v145
    %v204 = vmul.f32 %v202, %v146
    %v205 = vmul.f32 %v202, %v147
    %v206 = vmul.f32 %v202, %v148
    %v207 = vadd.f32 %v197, %v203
    %v208 = vadd.f32 %v198, %v204
    %v209 = vadd.f32 %v199, %v205
    %v210 = vadd.f32 %v200, %v206
    %s211 = sld [smem:[#allocation2 + $0x11]]
    %v212 = vstv %s211
    %v213 = vmul.f32 %v212, %v191
    %v214 = vmul.f32 %v212, %v192
    %v215 = vmul.f32 %v212, %v193
    %v216 = vmul.f32 %v212, %v194
    %v217 = vadd.f32 %v207, %v213
    %v218 = vadd.f32 %v208, %v214
    %v219 = vadd.f32 %v209, %v215
    %v220 = vadd.f32 %v210, %v216
    %s221 = sld [smem:[#allocation2 + $0x15]]
    %v222 = vstv %s221
    %v223 = vadd.f32 %v217, %v222
    %v224 = vadd.f32 %v218, %v222
    %v225 = vadd.f32 %v219, %v222
    %v226 = vadd.f32 %v220, %v222
    %s227 = sld [smem:[#allocation2 + $0x12]]
    %v228 = vstv %s227
    %v229 = vmul.f32 %v228, %v99
    %v230 = vmul.f32 %v228, %v100
    %v231 = vmul.f32 %v228, %v101
    %v232 = vmul.f32 %v228, %v102
    %s233 = sld [smem:[#allocation2 + $0x13]]
    %v234 = vstv %s233
    %v235 = vmul.f32 %v234, %v145
    %v236 = vmul.f32 %v234, %v146
    %v237 = vmul.f32 %v234, %v147
    %v238 = vmul.f32 %v234, %v148
    %v239 = vadd.f32 %v229, %v235
    %v240 = vadd.f32 %v230, %v236
    %v241 = vadd.f32 %v231, %v237
    %v242 = vadd.f32 %v232, %v238
    %s243 = sld [smem:[#allocation2 + $0x14]]
    %v244 = vstv %s243
    %v245 = vmul.f32 %v244, %v191
    %v246 = vmul.f32 %v244, %v192
    %v247 = vmul.f32 %v244, %v193
    %v248 = vmul.f32 %v244, %v194
    %v249 = vadd.f32 %v239, %v245
    %v250 = vadd.f32 %v240, %v246
    %v251 = vadd.f32 %v241, %v247
    %v252 = vadd.f32 %v242, %v248
    %s253 = sld [smem:[#allocation2 + $0x16]]
    %v254 = vstv %s253
    %v255 = vadd.f32 %v249, %v254
    %v256 = vadd.f32 %v250, %v254
    %v257 = vadd.f32 %v251, %v254
    %v258 = vadd.f32 %v252, %v254
    %259 = vst [vmem:[#allocation7] sm:$0xff] %v223
    %260 = vst [vmem:[#allocation7 + $0x8] sm:$0xff] %v224
    %261 = vst [vmem:[#allocation7 + $0x10] sm:$0xff] %v225
    %262 = vst [vmem:[#allocation7 + $0x18] sm:$0xff] %v226
    %263 = vst [vmem:[#allocation7 + $0x20] sm:$0xff] %v255
    %264 = vst [vmem:[#allocation7 + $0x28] sm:$0xff] %v256
    %265 = vst [vmem:[#allocation7 + $0x30] sm:$0xff] %v257
    %266 = vst [vmem:[#allocation7 + $0x38] sm:$0xff] %v258
    // Predicated region
    $region18: #{tpu_custom_call.1} parent=1 // pred_check
      _
    $region19: #{tpu_custom_call.1} parent=1 // pred_check_branch
      %268 = sbr.rel (0) target = $region21
    $region20: #{tpu_custom_call.1} parent=1 // pred_region
      %270 = vsyncadd [#allocation4], 0
      %s271 = sshll.u32 [#allocation7], 4
      %s272 = int_to_ptr.vmem [resolvable:$true] %s271
      %s273 = sshll.u32 %s2, 4
      %s274 = int_to_ptr.hbm [resolvable:$true] %s273
      %279 = dma.vmem_to_hbm [thread:$0]  %s272, 1024, %s274, [#allocation4], 512, 512, 32
    $region21: #{tpu_custom_call.1} parent=1 // pred_fallthru
      _
    // Predicated region
    $region22: #{tpu_custom_call.1} parent=1 // pred_check
      _
    $region23: #{tpu_custom_call.1} parent=1 // pred_check_branch
      %281 = sbr.rel (0) target = $region25
    $region24: #{tpu_custom_call.1} parent=1 // pred_region
      %283 = dma.done [#allocation4], 1024
    $region25: #{tpu_custom_call.1} parent=1 // pred_fallthru
      _
    %284 = vsyncpa [#allocation3], 1
    %285 = vsyncpa [#allocation4], 1
    %286 = vsyncpa [#allocation5], 1

</llo_original>
